<compile_context>
chip_gen: v6e
topology: v6e:2x2x1
jax: 0.10.0
libtpu: 0.0.40
codegen_flags: <defaults>
</compile_context>

<pallas_src>
import numpy as np
import jax
import jax.numpy as jnp
from jax.experimental import pallas as pl
from jax.experimental.pallas import tpu as pltpu

H1_TRUE, H2_TRUE = 400, 300
H1_PAD, H2_PAD = 512, 384          # lane-aligned (multiples of 128)


def _round_up(x, m):
    return (x + m - 1) // m * m


def qnetwork_kernel(state_ref, action_ref,
                    w1_ref, b1_ref,
                    w2x_ref, w2a_ref, b2_ref,
                    w3_ref, b3_ref,
                    out_ref):
    # fc1 + relu  (MXU, lane-aligned 512-wide output)
    x = jnp.dot(state_ref[...], w1_ref[...], preferred_element_type=jnp.float32)
    x = jnp.maximum(x + b1_ref[...], 0.0)

    # fc2 on concat([x, action]) expressed as split matmul, + relu (384-wide)
    h = jnp.dot(x, w2x_ref[...], preferred_element_type=jnp.float32)
    h = h + jnp.dot(action_ref[...], w2a_ref[...], preferred_element_type=jnp.float32)
    h = jnp.maximum(h + b2_ref[...], 0.0)

    # fc3 (out_features = 1): VPU multiply + lane reduction, keeps the MXU free
    q = jnp.sum(h * w3_ref[...], axis=-1, keepdims=True)
    out_ref[...] = q + b3_ref[...]


def qnetwork_forward(state, action, params, *, block_b=512):
    """state: (B, S), action: (B, A) -> (B, 1)"""
    B, S = state.shape
    A = action.shape[1]
    w1, b1, w2x, w2a, b2, w3, b3 = params
    H1 = w1.shape[1]
    H2 = w2x.shape[1]

    # Batch tile: multiple of 8 sublanes, capped to keep the per-step VMEM
    # footprint small (fits comfortably inside v7x's smaller VMEM too).
    tb = min(block_b, _round_up(B, 8))
    Bp = _round_up(B, tb)
    if Bp != B:
        pad = Bp - B
        state = jnp.pad(state, ((0, pad), (0, 0)))
        action = jnp.pad(action, ((0, pad), (0, 0)))

    grid = (Bp // tb,)

    def batch_map(i):
        return (i, 0)

    def pinned(i):          # weights/biases: same block every step -> stay resident
        return (0, 0)

    flops = 2 * Bp * (S * H1 + H1 * H2 + A * H2 + H2)
    bytes_accessed = 4 * (Bp * (S + A + 1)
                          + S * H1 + H1 + H1 * H2 + A * H2 + H2 + H2 + 1)

    out = pl.pallas_call(
        qnetwork_kernel,
        out_shape=jax.ShapeDtypeStruct((Bp, 1), jnp.float32),
        grid_spec=pltpu.PrefetchScalarGridSpec(
            num_scalar_prefetch=0,
            grid=grid,
            in_specs=[
                pl.BlockSpec((tb, S), batch_map),   # state tile
                pl.BlockSpec((tb, A), batch_map),   # action tile
                pl.BlockSpec((S, H1), pinned),      # w1
                pl.BlockSpec((1, H1), pinned),      # b1
                pl.BlockSpec((H1, H2), pinned),     # w2 (x part)
                pl.BlockSpec((A, H2), pinned),      # w2 (action part)
                pl.BlockSpec((1, H2), pinned),      # b2
                pl.BlockSpec((1, H2), pinned),      # w3 as a row
                pl.BlockSpec((1, 1), pinned),       # b3
            ],
            out_specs=pl.BlockSpec((tb, 1), batch_map),
        ),
        compiler_params=pltpu.CompilerParams(
            dimension_semantics=("parallel",),      # shard batch tiles across TCs (v7x)
            vmem_limit_bytes=32 * 1024 * 1024,
        ),
        cost_estimate=pl.CostEstimate(
            flops=flops, transcendentals=0, bytes_accessed=bytes_accessed),
    )(state, action, w1, b1, w2x, w2a, b2, w3, b3)

    return out[:B]


def init_params(key, state_dim, action_dim,
                h1=H1_TRUE, h2=H2_TRUE, h1_pad=H1_PAD, h2_pad=H2_PAD):
    """Deterministic init mirroring the PyTorch module's _init().

    PyTorch nn.Linear weight has shape (out, in); hidden_init uses size()[0]
    (= out_features), so lim1 = 1/sqrt(400), lim2 = 1/sqrt(300); fc3 weights are
    uniform(-0.003, 0.003).  Biases keep PyTorch's default
    uniform(-1/sqrt(in_features), +1/sqrt(in_features)).
    Weights are stored (in, out) for the kernel layout and zero-padded to the
    lane-aligned hidden sizes; padding is exactly zero so numerics are unchanged.
    """
    ks = jax.random.split(key, 6)
    lim1 = 1.0 / np.sqrt(h1)
    lim2 = 1.0 / np.sqrt(h2)
    lim3 = 0.003

    w1 = jax.random.uniform(ks[0], (state_dim, h1), jnp.float32, -lim1, lim1)
    b1 = jax.random.uniform(ks[1], (1, h1), jnp.float32,
                            -1.0 / np.sqrt(state_dim), 1.0 / np.sqrt(state_dim))

    w2 = jax.random.uniform(ks[2], (h1 + action_dim, h2), jnp.float32, -lim2, lim2)
    w2x, w2a = w2[:h1], w2[h1:]
    b2 = jax.random.uniform(ks[3], (1, h2), jnp.float32,
                            -1.0 / np.sqrt(h1 + action_dim),
                            1.0 / np.sqrt(h1 + action_dim))

    w3 = jax.random.uniform(ks[4], (1, h2), jnp.float32, -lim3, lim3)  # row vector
    b3 = jax.random.uniform(ks[5], (1, 1), jnp.float32,
                            -1.0 / np.sqrt(h2), 1.0 / np.sqrt(h2))

    # Zero-pad hidden dims to lane-aligned sizes.
    w1p = jnp.zeros((state_dim, h1_pad), jnp.float32).at[:, :h1].set(w1)
    b1p = jnp.zeros((1, h1_pad), jnp.float32).at[:, :h1].set(b1)
    w2xp = jnp.zeros((h1_pad, h2_pad), jnp.float32).at[:h1, :h2].set(w2x)
    w2ap = jnp.zeros((action_dim, h2_pad), jnp.float32).at[:, :h2].set(w2a)
    b2p = jnp.zeros((1, h2_pad), jnp.float32).at[:, :h2].set(b2)
    w3p = jnp.zeros((1, h2_pad), jnp.float32).at[:, :h2].set(w3)
    return (w1p, b1p, w2xp, w2ap, b2p, w3p, b3)


def qnetwork_ref(state, action, params):
    """Pure-JAX reference (same math, no Pallas) for correctness checking."""
    w1, b1, w2x, w2a, b2, w3, b3 = params
    x = jnp.maximum(state @ w1 + b1, 0.0)
    h = jnp.maximum(x @ w2x + action @ w2a + b2, 0.0)
    return jnp.sum(h * w3, axis=-1, keepdims=True) + b3


if __name__ == "__main__":
    B, STATE_DIM, ACTION_DIM = 8, 16, 4

    key = jax.random.PRNGKey(0)
    k_state, k_action, k_params = jax.random.split(key, 3)

    state = jax.random.normal(k_state, (B, STATE_DIM), jnp.float32)
    action = jax.random.normal(k_action, (B, ACTION_DIM), jnp.float32)
    params = init_params(k_params, STATE_DIM, ACTION_DIM)

    out = qnetwork_forward(state, action, params)
    out = jax.block_until_ready(out)

    ref = qnetwork_ref(state, action, params)
    np.testing.assert_allclose(np.asarray(out), np.asarray(ref), rtol=1e-5, atol=1e-5)
    assert out.shape == (B, 1)

    print("KERNEL_OK")
</pallas_src>

<mosaic_0001>
module attributes {stable_mosaic.version = 11 : i64} {
  func.func @qnetwork_kernel(%arg0: i32, %arg1: memref<8x16xf32, #tpu.memory_space<vmem>>, %arg2: memref<8x4xf32, #tpu.memory_space<vmem>>, %arg3: memref<16x512xf32, #tpu.memory_space<vmem>>, %arg4: memref<1x512xf32, #tpu.memory_space<vmem>>, %arg5: memref<512x384xf32, #tpu.memory_space<vmem>>, %arg6: memref<4x384xf32, #tpu.memory_space<vmem>>, %arg7: memref<1x384xf32, #tpu.memory_space<vmem>>, %arg8: memref<1x384xf32, #tpu.memory_space<vmem>>, %arg9: memref<1x1xf32, #tpu.memory_space<vmem>>, %arg10: memref<8x1xf32, #tpu.memory_space<vmem>>) attributes {dimension_semantics = [#tpu.dimension_semantics<parallel>], iteration_bounds = array<i64: 1>, scalar_prefetch = 0 : i64, scratch_operands = 0 : i64, tpu.core_type = #tpu.core_type<tc>, window_params = [{transform_indices = @transform_0, window_bounds = array<i64: 8, 16>}, {transform_indices = @transform_1, window_bounds = array<i64: 8, 4>}, {pipeline_mode = #tpu.pipeline_mode<synchronous>, transform_indices = @transform_2, window_bounds = array<i64: 16, 512>}, {pipeline_mode = #tpu.pipeline_mode<synchronous>, transform_indices = @transform_3, window_bounds = array<i64: 1, 512>}, {pipeline_mode = #tpu.pipeline_mode<synchronous>, transform_indices = @transform_4, window_bounds = array<i64: 512, 384>}, {pipeline_mode = #tpu.pipeline_mode<synchronous>, transform_indices = @transform_5, window_bounds = array<i64: 4, 384>}, {pipeline_mode = #tpu.pipeline_mode<synchronous>, transform_indices = @transform_6, window_bounds = array<i64: 1, 384>}, {pipeline_mode = #tpu.pipeline_mode<synchronous>, transform_indices = @transform_7, window_bounds = array<i64: 1, 384>}, {pipeline_mode = #tpu.pipeline_mode<synchronous>, transform_indices = @transform_8, window_bounds = array<i64: 1, 1>}, {transform_indices = @transform_9, window_bounds = array<i64: 8, 1>}]} {
    %c0 = arith.constant 0 : index
    %c0_0 = arith.constant 0 : index
    %0 = vector.load %arg1[%c0, %c0_0] : memref<8x16xf32, #tpu.memory_space<vmem>>, vector<8x16xf32>
    %c0_1 = arith.constant 0 : index
    %c0_2 = arith.constant 0 : index
    %1 = vector.load %arg3[%c0_1, %c0_2] : memref<16x512xf32, #tpu.memory_space<vmem>>, vector<16x512xf32>
    %cst = arith.constant dense<0.000000e+00> : vector<8x512xf32>
    %2 = tpu.matmul %0, %1, %cst {dimension_numbers = #tpu.dot_dimension_numbers<[1], [0], [0], [1], [0, 0, 1, 1], [], []>} : vector<8x16xf32>, vector<16x512xf32>, vector<8x512xf32> -> vector<8x512xf32>
    %c0_3 = arith.constant 0 : index
    %c0_4 = arith.constant 0 : index
    %3 = vector.load %arg4[%c0_3, %c0_4] : memref<1x512xf32, #tpu.memory_space<vmem>>, vector<1x512xf32>
    %4 = vector.broadcast %3 : vector<1x512xf32> to vector<8x512xf32>
    %5 = arith.addf %2, %4 : vector<8x512xf32>
    %cst_5 = arith.constant 0.000000e+00 : f32
    %6 = vector.broadcast %cst_5 : f32 to vector<8x512xf32>
    %7 = arith.maximumf %5, %6 : vector<8x512xf32>
    %c0_6 = arith.constant 0 : index
    %c0_7 = arith.constant 0 : index
    %8 = vector.load %arg5[%c0_6, %c0_7] : memref<512x384xf32, #tpu.memory_space<vmem>>, vector<512x384xf32>
    %cst_8 = arith.constant dense<0.000000e+00> : vector<8x384xf32>
    %9 = tpu.matmul %7, %8, %cst_8 {dimension_numbers = #tpu.dot_dimension_numbers<[1], [0], [0], [1], [0, 0, 1, 1], [], []>} : vector<8x512xf32>, vector<512x384xf32>, vector<8x384xf32> -> vector<8x384xf32>
    %c0_9 = arith.constant 0 : index
    %c0_10 = arith.constant 0 : index
    %10 = vector.load %arg2[%c0_9, %c0_10] : memref<8x4xf32, #tpu.memory_space<vmem>>, vector<8x4xf32>
    %c0_11 = arith.constant 0 : index
    %c0_12 = arith.constant 0 : index
    %11 = vector.load %arg6[%c0_11, %c0_12] : memref<4x384xf32, #tpu.memory_space<vmem>>, vector<4x384xf32>
    %cst_13 = arith.constant dense<0.000000e+00> : vector<8x384xf32>
    %12 = tpu.matmul %10, %11, %cst_13 {dimension_numbers = #tpu.dot_dimension_numbers<[1], [0], [0], [1], [0, 0, 1, 1], [], []>} : vector<8x4xf32>, vector<4x384xf32>, vector<8x384xf32> -> vector<8x384xf32>
    %13 = arith.addf %9, %12 : vector<8x384xf32>
    %c0_14 = arith.constant 0 : index
    %c0_15 = arith.constant 0 : index
    %14 = vector.load %arg7[%c0_14, %c0_15] : memref<1x384xf32, #tpu.memory_space<vmem>>, vector<1x384xf32>
    %15 = vector.broadcast %14 : vector<1x384xf32> to vector<8x384xf32>
    %16 = arith.addf %13, %15 : vector<8x384xf32>
    %cst_16 = arith.constant 0.000000e+00 : f32
    %17 = vector.broadcast %cst_16 : f32 to vector<8x384xf32>
    %18 = arith.maximumf %16, %17 : vector<8x384xf32>
    %c0_17 = arith.constant 0 : index
    %c0_18 = arith.constant 0 : index
    %19 = vector.load %arg8[%c0_17, %c0_18] : memref<1x384xf32, #tpu.memory_space<vmem>>, vector<1x384xf32>
    %20 = vector.broadcast %19 : vector<1x384xf32> to vector<8x384xf32>
    %21 = arith.mulf %18, %20 : vector<8x384xf32>
    %cst_19 = arith.constant dense<0.000000e+00> : vector<8xf32>
    %22 = vector.multi_reduction <add>, %21, %cst_19 [1] : vector<8x384xf32> to vector<8xf32>
    %23 = vector.shape_cast %22 : vector<8xf32> to vector<8x1xf32>
    %c0_20 = arith.constant 0 : index
    %c0_21 = arith.constant 0 : index
    %24 = vector.load %arg9[%c0_20, %c0_21] : memref<1x1xf32, #tpu.memory_space<vmem>>, vector<1x1xf32>
    %25 = vector.broadcast %24 : vector<1x1xf32> to vector<8x1xf32>
    %26 = arith.addf %23, %25 : vector<8x1xf32>
    %c0_22 = arith.constant 0 : index
    %c0_23 = arith.constant 0 : index
    %27 = vector.load %arg10[%c0_22, %c0_23] : memref<8x1xf32, #tpu.memory_space<vmem>>, vector<8x1xf32>
    tpu.vector_store %arg10[%c0_22, %c0_23], %26 {strides = array<i32>} : memref<8x1xf32, #tpu.memory_space<vmem>>, vector<8x1xf32>,
    return
  }
  func.func @transform_0(%arg0: i32) -> (i32, i32) {
    %c0_i32 = arith.constant 0 : i32
    %c0_i32_0 = arith.constant 0 : i32
    return %arg0, %c0_i32 : i32, i32
  }
  func.func @transform_1(%arg0: i32) -> (i32, i32) {
    %c0_i32 = arith.constant 0 : i32
    %c0_i32_0 = arith.constant 0 : i32
    return %arg0, %c0_i32 : i32, i32
  }
  func.func @transform_2(%arg0: i32) -> (i32, i32) {
    %c0_i32 = arith.constant 0 : i32
    %c0_i32_0 = arith.constant 0 : i32
    %c0_i32_1 = arith.constant 0 : i32
    return %c0_i32, %c0_i32_0 : i32, i32
  }
  func.func @transform_3(%arg0: i32) -> (i32, i32) {
    %c0_i32 = arith.constant 0 : i32
    %c0_i32_0 = arith.constant 0 : i32
    %c0_i32_1 = arith.constant 0 : i32
    return %c0_i32, %c0_i32_0 : i32, i32
  }
  func.func @transform_4(%arg0: i32) -> (i32, i32) {
    %c0_i32 = arith.constant 0 : i32
    %c0_i32_0 = arith.constant 0 : i32
    %c0_i32_1 = arith.constant 0 : i32
    return %c0_i32, %c0_i32_0 : i32, i32
  }
  func.func @transform_5(%arg0: i32) -> (i32, i32) {
    %c0_i32 = arith.constant 0 : i32
    %c0_i32_0 = arith.constant 0 : i32
    %c0_i32_1 = arith.constant 0 : i32
    return %c0_i32, %c0_i32_0 : i32, i32
  }
  func.func @transform_6(%arg0: i32) -> (i32, i32) {
    %c0_i32 = arith.constant 0 : i32
    %c0_i32_0 = arith.constant 0 : i32
    %c0_i32_1 = arith.constant 0 : i32
    return %c0_i32, %c0_i32_0 : i32, i32
  }
  func.func @transform_7(%arg0: i32) -> (i32, i32) {
    %c0_i32 = arith.constant 0 : i32
    %c0_i32_0 = arith.constant 0 : i32
    %c0_i32_1 = arith.constant 0 : i32
    return %c0_i32, %c0_i32_0 : i32, i32
  }
  func.func @transform_8(%arg0: i32) -> (i32, i32) {
    %c0_i32 = arith.constant 0 : i32
    %c0_i32_0 = arith.constant 0 : i32
    %c0_i32_1 = arith.constant 0 : i32
    return %c0_i32, %c0_i32_0 : i32, i32
  }
  func.func @transform_9(%arg0: i32) -> (i32, i32) {
    %c0_i32 = arith.constant 0 : i32
    %c0_i32_0 = arith.constant 0 : i32
    return %arg0, %c0_i32 : i32, i32
  }
}

</mosaic_0001>

<llo_original>
// kernel: tpu_custom_call.1
$region0: #{tpu_custom_call.1}
  #allocation0 [shape = 'u32[]', space=smem, size = 0x4, offset = 0x4, fixed_abs, tag = 'smem constant byte address 0x4 - core index']
  #allocation1 [shape = 'u32[144,128]{1,0:T(1,128)}', space=vmem, size = 0x12000, scoped, tag = 'internal scratch']
  #allocation2 [shape = 'f32[1,1]{1,0:T(1,128)S(1)}', space=vmem, size = 0x200, scoped, tag = 'scoped memory for tpu_custom_call.1']
  %s0 = inlined_call_operand.vmem [shape: f32[8,16], index: 0, kind: input, shape index: {}]
  %s1 = inlined_call_operand.vmem [shape: f32[8,4], index: 1, kind: input, shape index: {}]
  %s2 = inlined_call_operand.hbm [shape: f32[16,512], index: 2, kind: input, shape index: {}]
  %s3 = inlined_call_operand.hbm [shape: f32[1,512], index: 3, kind: input, shape index: {}]
  %s4 = inlined_call_operand.hbm [shape: f32[512,384], index: 4, kind: input, shape index: {}]
  %s5 = inlined_call_operand.vmem [shape: f32[4,384], index: 5, kind: input, shape index: {}]
  %s6 = inlined_call_operand.vmem [shape: f32[1,384], index: 6, kind: input, shape index: {}]
  %s7 = inlined_call_operand.vmem [shape: f32[1,384], index: 7, kind: input, shape index: {}]
  %s8 = inlined_call_operand.<no memory space> [shape: f32[1,1], index: 8, kind: input, shape index: {}]
  %s9 = inlined_call_operand.vmem [shape: f32[8,1], index: 9, kind: output, shape index: {}]
  %s10 = sld [smem:[#allocation0]]
  $region58: #{tpu_custom_call.1} parent=0
    _
  %s12 = ssub.s32 1, %s10
  %s13 = scalar_select 0, %s12, %s10
  %v14 = vstv %s8
  %15 = vst [vmem:[#allocation2] sm:$0x1] %v14
  $region1: #{tpu_custom_call.1} parent=0
    #allocation3 [shape = 'u8[32768]{0}', space=vmem, size = 0x8000, scoped, tag = 'input window, operand 2, single buffered']
    #allocation4 [shape = 's32[1]{0}', space=sflag, size = 0x4, scoped, tag = 'scoped memory for tpu_custom_call.1']
    #allocation5 [shape = 'u8[2048]{0}', space=vmem, size = 0x800, scoped, tag = 'input window, operand 3, single buffered']
    #allocation6 [shape = 's32[1]{0}', space=sflag, size = 0x4, scoped, tag = 'scoped memory for tpu_custom_call.1']
    #allocation7 [shape = 'u8[786432]{0}', space=vmem, size = 0xc0000, scoped, tag = 'input window, operand 4, single buffered']
    %16 = vsyncpa [#allocation4], 0
    %17 = vsyncpa [#allocation6], 0
    // Predicated region
    $region2: #{tpu_custom_call.1} parent=1 // pred_check
      _
    $region3: #{tpu_custom_call.1} parent=1 // pred_check_branch
      %19 = sbr.rel (0) target = $region5
    $region4: #{tpu_custom_call.1} parent=1 // pred_region
      _
    $region5: #{tpu_custom_call.1} parent=1 // pred_fallthru
      _
    // Predicated region
    $region6: #{tpu_custom_call.1} parent=1 // pred_check
      _
    $region7: #{tpu_custom_call.1} parent=1 // pred_check_branch
      %21 = sbr.rel (0) target = $region9
    $region8: #{tpu_custom_call.1} parent=1 // pred_region
      _
    $region9: #{tpu_custom_call.1} parent=1 // pred_fallthru
      _
    // Predicated region
    $region10: #{tpu_custom_call.1} parent=1 // pred_check
      _
    $region11: #{tpu_custom_call.1} parent=1 // pred_check_branch
      %23 = sbr.rel (0) target = $region13
    $region12: #{tpu_custom_call.1} parent=1 // pred_region
      %s25 = ssub.s32 1024, 1024
      %26 = vsyncadd [#allocation4], %s25
      %s27 = sshll.u32 [#allocation3], 4
      %s28 = int_to_ptr.vmem [resolvable:$true] %s27
      %33 = dma.hbm_to_vmem [thread:$0]  %s2, 1024, %s28, [#allocation4], 512, 512, 32
    $region13: #{tpu_custom_call.1} parent=1 // pred_fallthru
      _
    // Predicated region
    $region14: #{tpu_custom_call.1} parent=1 // pred_check
      _
    $region15: #{tpu_custom_call.1} parent=1 // pred_check_branch
      %35 = sbr.rel (0) target = $region17
    $region16: #{tpu_custom_call.1} parent=1 // pred_region
      %s37 = ssub.s32 64, 64
      %38 = vsyncadd [#allocation6], %s37
      %s40 = sshll.u32 [#allocation5], 4
      %s41 = int_to_ptr.vmem [resolvable:$true] %s40
      %43 = dma.hbm_to_vmem [thread:$0]  %s3, 64, %s41, [#allocation6]
    $region17: #{tpu_custom_call.1} parent=1 // pred_fallthru
      _
    // Predicated region
    $region18: #{tpu_custom_call.1} parent=1 // pred_check
      _
    $region19: #{tpu_custom_call.1} parent=1 // pred_check_branch
      %45 = sbr.rel (0) target = $region21
    $region20: #{tpu_custom_call.1} parent=1 // pred_region
      %s47 = ssub.s32 24576, 24576
      %48 = vsyncadd [#allocation6], %s47
      %s49 = sshll.u32 [#allocation7], 4
      %s50 = int_to_ptr.vmem [resolvable:$true] %s49
      %55 = dma.hbm_to_vmem [thread:$0]  %s4, 24576, %s50, [#allocation6], 384, 384, 24
    $region21: #{tpu_custom_call.1} parent=1 // pred_fallthru
      _
    // Predicated region
    $region22: #{tpu_custom_call.1} parent=1 // pred_check
      _
    $region23: #{tpu_custom_call.1} parent=1 // pred_check_branch
      %57 = sbr.rel (0) target = $region25
    $region24: #{tpu_custom_call.1} parent=1 // pred_region
      _
    $region25: #{tpu_custom_call.1} parent=1 // pred_fallthru
      _
    // Predicated region
    $region26: #{tpu_custom_call.1} parent=1 // pred_check
      _
    $region27: #{tpu_custom_call.1} parent=1 // pred_check_branch
      %59 = sbr.rel (0) target = $region29
    $region28: #{tpu_custom_call.1} parent=1 // pred_region
      _
    $region29: #{tpu_custom_call.1} parent=1 // pred_fallthru
      _
    // Predicated region
    $region30: #{tpu_custom_call.1} parent=1 // pred_check
      _
    $region31: #{tpu_custom_call.1} parent=1 // pred_check_branch
      %61 = sbr.rel (0) target = $region33
    $region32: #{tpu_custom_call.1} parent=1 // pred_region
      _
    $region33: #{tpu_custom_call.1} parent=1 // pred_fallthru
      _
    // Predicated region
    $region34: #{tpu_custom_call.1} parent=1 // pred_check
      _
    $region35: #{tpu_custom_call.1} parent=1 // pred_check_branch
      %63 = sbr.rel (0) target = $region37
    $region36: #{tpu_custom_call.1} parent=1 // pred_region
      _
    $region37: #{tpu_custom_call.1} parent=1 // pred_fallthru
      _
    // Predicated region
    $region38: #{tpu_custom_call.1} parent=1 // pred_check
      _
    $region39: #{tpu_custom_call.1} parent=1 // pred_check_branch
      %65 = sbr.rel (0) target = $region41
    $region40: #{tpu_custom_call.1} parent=1 // pred_region
      %66 = dma.done [#allocation4], 1024
    $region41: #{tpu_custom_call.1} parent=1 // pred_fallthru
      _
    // Predicated region
    $region42: #{tpu_custom_call.1} parent=1 // pred_check
      _
    $region43: #{tpu_custom_call.1} parent=1 // pred_check_branch
      %68 = sbr.rel (0) target = $region45
    $region44: #{tpu_custom_call.1} parent=1 // pred_region
      %69 = dma.done [#allocation6], 64
    $region45: #{tpu_custom_call.1} parent=1 // pred_fallthru
      _
    // Predicated region
    $region46: #{tpu_custom_call.1} parent=1 // pred_check
      _
    $region47: #{tpu_custom_call.1} parent=1 // pred_check_branch
      %71 = sbr.rel (0) target = $region49
    $region48: #{tpu_custom_call.1} parent=1 // pred_region
      %72 = dma.done [#allocation6], 24576
    $region49: #{tpu_custom_call.1} parent=1 // pred_fallthru
      _
    %v73 = vld [vmem:[%s0] sm:$0xff]
    %v74 = vld [vmem:[#allocation3] sm:$0xff]
    %v75 = vld [vmem:[#allocation3 + $0x8] sm:$0xff]
    %v76 = vld [vmem:[#allocation3 + $0x10] sm:$0xff]
    %v77 = vld [vmem:[#allocation3 + $0x18] sm:$0xff]
    %v78 = vld [vmem:[#allocation3 + $0x20] sm:$0xff]
    %v79 = vld [vmem:[#allocation3 + $0x28] sm:$0xff]
    %v80 = vld [vmem:[#allocation3 + $0x30] sm:$0xff]
    %v81 = vld [vmem:[#allocation3 + $0x38] sm:$0xff]
    %v82 = vld [vmem:[#allocation5] sm:$0xf]
    %v84 = vlaneseq
    %v85 = vshrl.u32 %v84, 7
    %v86 = vsub.s32 0, %v85
    %v87 = vrot.slane %v82, %v86
    %v88 = vlaneseq
    %v89 = vshrl.u32 %v88, 7
    %v90 = vsub.s32 1, %v89
    %v91 = vrot.slane %v82, %v90
    %v92 = vlaneseq
    %v93 = vshrl.u32 %v92, 7
    %v94 = vsub.s32 2, %v93
    %v95 = vrot.slane %v82, %v94
    %v96 = vlaneseq
    %v97 = vshrl.u32 %v96, 7
    %v98 = vsub.s32 3, %v97
    %v99 = vrot.slane %v82, %v98
    %vm104 = vcmask 130048
    %v106 = vsel %vm104, %v73, 0
    %108 = vmatprep.subr.mxu0 0.0
    %109 = vmatpush1.msra.mxu0 0.0
    %110 = vmatprep.subr.mxu0 0.0
    %111 = vmatpush1.msra.mxu0 0.0
    %112 = vmatprep.subr.mxu0 0.0
    %113 = vmatpush1.msra.mxu0 0.0
    %114 = vmatprep.subr.mxu0 0.0
    %115 = vmatpush1.msra.mxu0 0.0
    %116 = vmatprep.subr.mxu0 0.0
    %117 = vmatpush1.msra.mxu0 0.0
    %118 = vmatprep.subr.mxu0 0.0
    %119 = vmatpush1.msra.mxu0 0.0
    %120 = vmatprep.subr.mxu0 0.0
    %121 = vmatpush1.msra.mxu0 0.0
    %122 = vmatprep.subr.mxu0 0.0
    %123 = vmatpush1.msra.mxu0 0.0
    %124 = vmatprep.subr.mxu0 0.0
    %125 = vmatpush1.msra.mxu0 0.0
    %126 = vmatprep.subr.mxu0 0.0
    %127 = vmatpush1.msra.mxu0 0.0
    %128 = vmatprep.subr.mxu0 0.0
    %129 = vmatpush1.msra.mxu0 0.0
    %130 = vmatprep.subr.mxu0 0.0
    %131 = vmatpush1.msra.mxu0 0.0
    %132 = vmatprep.subr.mxu0 0.0
    %133 = vmatpush1.msra.mxu0 0.0
    %134 = vmatprep.subr.mxu0 0.0
    %135 = vmatpush1.msra.mxu0 0.0
    %136 = vmatprep.subr.mxu0 %v79
    %137 = vmatpush1.msra.mxu0 %v78
    %138 = vmatprep.subr.mxu0 %v75
    %139 = vmatpush1.msra.mxu0 %v74
    %140 = vmatprep.subr.mxu0 0.0
    %141 = vmatpush2.msra.mxu0 0.0
    %142 = vmatprep.subr.mxu0 0.0
    %143 = vmatpush2.msra.mxu0 0.0
    %144 = vmatprep.subr.mxu0 0.0
    %145 = vmatpush2.msra.mxu0 0.0
    %146 = vmatprep.subr.mxu0 0.0
    %147 = vmatpush2.msra.mxu0 0.0
    %148 = vmatprep.subr.mxu0 0.0
    %149 = vmatpush2.msra.mxu0 0.0
    %150 = vmatprep.subr.mxu0 0.0
    %151 = vmatpush2.msra.mxu0 0.0
    %152 = vmatprep.subr.mxu0 0.0
    %153 = vmatpush2.msra.mxu0 0.0
    %154 = vmatprep.subr.mxu0 0.0
    %155 = vmatpush2.msra.mxu0 0.0
    %156 = vmatprep.subr.mxu0 0.0
    %157 = vmatpush2.msra.mxu0 0.0
    %158 = vmatprep.subr.mxu0 0.0
    %159 = vmatpush2.msra.mxu0 0.0
    %160 = vmatprep.subr.mxu0 0.0
    %161 = vmatpush2.msra.mxu0 0.0
    %162 = vmatprep.subr.mxu0 0.0
    %163 = vmatpush2.msra.mxu0 0.0
    %164 = vmatprep.subr.mxu0 0.0
    %165 = vmatpush2.msra.mxu0 0.0
    %166 = vmatprep.subr.mxu0 0.0
    %167 = vmatpush2.msra.mxu0 0.0
    %168 = vmatprep.subr.mxu0 0.0
    %169 = vmatpush2.msra.mxu0 0.0
    %170 = vmatprep.subr.mxu0 0.0
    %171 = vmatpush2.msra.mxu0 0.0
    %172 = vmatprep.mubr.f32.mxu0 0.0
    %173 = vmatmul.mubr.f32.gmra.mxu0 %v106
    %v174 = vpop.f32.mrf.mxu0
    %v175 = vadd.f32 %v87, %v174
    %v176 = vpop.f32.mrf.mxu0
    %v177 = vadd.f32 %v91, %v176
    %178 = vdwg.mxu0
    %179 = vmatprep.subr.mxu0 0.0
    %180 = vmatpush1.msra.mxu0 0.0
    %181 = vmatprep.subr.mxu0 0.0
    %182 = vmatpush1.msra.mxu0 0.0
    %183 = vmatprep.subr.mxu0 0.0
    %184 = vmatpush1.msra.mxu0 0.0
    %185 = vmatprep.subr.mxu0 0.0
    %186 = vmatpush1.msra.mxu0 0.0
    %187 = vmatprep.subr.mxu0 0.0
    %188 = vmatpush1.msra.mxu0 0.0
    %189 = vmatprep.subr.mxu0 0.0
    %190 = vmatpush1.msra.mxu0 0.0
    %191 = vmatprep.subr.mxu0 0.0
    %192 = vmatpush1.msra.mxu0 0.0
    %193 = vmatprep.subr.mxu0 0.0
    %194 = vmatpush1.msra.mxu0 0.0
    %195 = vmatprep.subr.mxu0 0.0
    %196 = vmatpush1.msra.mxu0 0.0
    %197 = vmatprep.subr.mxu0 0.0
    %198 = vmatpush1.msra.mxu0 0.0
    %199 = vmatprep.subr.mxu0 0.0
    %200 = vmatpush1.msra.mxu0 0.0
    %201 = vmatprep.subr.mxu0 0.0
    %202 = vmatpush1.msra.mxu0 0.0
    %203 = vmatprep.subr.mxu0 0.0
    %204 = vmatpush1.msra.mxu0 0.0
    %205 = vmatprep.subr.mxu0 0.0
    %206 = vmatpush1.msra.mxu0 0.0
    %207 = vmatprep.subr.mxu0 %v81
    %208 = vmatpush1.msra.mxu0 %v80
    %209 = vmatprep.subr.mxu0 %v77
    %210 = vmatpush1.msra.mxu0 %v76
    %211 = vmatprep.subr.mxu0 0.0
    %212 = vmatpush2.msra.mxu0 0.0
    %213 = vmatprep.subr.mxu0 0.0
    %214 = vmatpush2.msra.mxu0 0.0
    %215 = vmatprep.subr.mxu0 0.0
    %216 = vmatpush2.msra.mxu0 0.0
    %217 = vmatprep.subr.mxu0 0.0
    %218 = vmatpush2.msra.mxu0 0.0
    %219 = vmatprep.subr.mxu0 0.0
    %220 = vmatpush2.msra.mxu0 0.0
    %221 = vmatprep.subr.mxu0 0.0
    %222 = vmatpush2.msra.mxu0 0.0
    %223 = vmatprep.subr.mxu0 0.0
    %224 = vmatpush2.msra.mxu0 0.0
    %225 = vmatprep.subr.mxu0 0.0
    %226 = vmatpush2.msra.mxu0 0.0
    %227 = vmatprep.subr.mxu0 0.0
    %228 = vmatpush2.msra.mxu0 0.0
    %229 = vmatprep.subr.mxu0 0.0
    %230 = vmatpush2.msra.mxu0 0.0
    %231 = vmatprep.subr.mxu0 0.0
    %232 = vmatpush2.msra.mxu0 0.0
    %233 = vmatprep.subr.mxu0 0.0
    %234 = vmatpush2.msra.mxu0 0.0
    %235 = vmatprep.subr.mxu0 0.0
    %236 = vmatpush2.msra.mxu0 0.0
    %237 = vmatprep.subr.mxu0 0.0
    %238 = vmatpush2.msra.mxu0 0.0
    %239 = vmatprep.subr.mxu0 0.0
    %240 = vmatpush2.msra.mxu0 0.0
    %241 = vmatprep.subr.mxu0 0.0
    %242 = vmatpush2.msra.mxu0 0.0
    %243 = vmatprep.mubr.f32.mxu0 0.0
    %244 = vmatmul.mubr.f32.gmra.mxu0 %v106
    %v245 = vpop.f32.mrf.mxu0
    %v246 = vadd.f32 %v95, %v245
    %v247 = vpop.f32.mrf.mxu0
    %v248 = vadd.f32 %v99, %v247
    %249 = vdwg.mxu0
    %v250 = vmax.f32 %v175, 0.0
    %v251 = vmax.f32 %v177, 0.0
    %v252 = vmax.f32 %v246, 0.0
    %v253 = vmax.f32 %v248, 0.0
    %v254 = vld [vmem:[#allocation7] sm:$0xff]
    %v255 = vld [vmem:[#allocation7 + $0x8] sm:$0xff]
    %v256 = vld [vmem:[#allocation7 + $0x10] sm:$0xff]
    %v257 = vld [vmem:[#allocation7 + $0x18] sm:$0xff]
    %v258 = vld [vmem:[#allocation7 + $0x20] sm:$0xff]
    %v259 = vld [vmem:[#allocation7 + $0x28] sm:$0xff]
    %v260 = vld [vmem:[#allocation7 + $0x30] sm:$0xff]
    %v261 = vld [vmem:[#allocation7 + $0x38] sm:$0xff]
    %v262 = vld [vmem:[#allocation7 + $0x40] sm:$0xff]
    %v263 = vld [vmem:[#allocation7 + $0x48] sm:$0xff]
    %v264 = vld [vmem:[#allocation7 + $0x50] sm:$0xff]
    %v265 = vld [vmem:[#allocation7 + $0x58] sm:$0xff]
    %v266 = vld [vmem:[#allocation7 + $0x60] sm:$0xff]
    %v267 = vld [vmem:[#allocation7 + $0x68] sm:$0xff]
    %v268 = vld [vmem:[#allocation7 + $0x70] sm:$0xff]
    %v269 = vld [vmem:[#allocation7 + $0x78] sm:$0xff]
    %v270 = vld [vmem:[#allocation7 + $0x80] sm:$0xff]
    %v271 = vld [vmem:[#allocation7 + $0x88] sm:$0xff]
    %v272 = vld [vmem:[#allocation7 + $0x90] sm:$0xff]
    %v273 = vld [vmem:[#allocation7 + $0x98] sm:$0xff]
    %v274 = vld [vmem:[#allocation7 + $0xa0] sm:$0xff]
    %v275 = vld [vmem:[#allocation7 + $0xa8] sm:$0xff]
    %v276 = vld [vmem:[#allocation7 + $0xb0] sm:$0xff]
    %v277 = vld [vmem:[#allocation7 + $0xb8] sm:$0xff]
    %v278 = vld [vmem:[#allocation7 + $0xc0] sm:$0xff]
    %v279 = vld [vmem:[#allocation7 + $0xc8] sm:$0xff]
    %v280 = vld [vmem:[#allocation7 + $0xd0] sm:$0xff]
    %v281 = vld [vmem:[#allocation7 + $0xd8] sm:$0xff]
    %v282 = vld [vmem:[#allocation7 + $0xe0] sm:$0xff]
    %v283 = vld [vmem:[#allocation7 + $0xe8] sm:$0xff]
    %v284 = vld [vmem:[#allocation7 + $0xf0] sm:$0xff]
    %v285 = vld [vmem:[#allocation7 + $0xf8] sm:$0xff]
    %v286 = vld [vmem:[#allocation7 + $0x100] sm:$0xff]
    %v287 = vld [vmem:[#allocation7 + $0x108] sm:$0xff]
    %v288 = vld [vmem:[#allocation7 + $0x110] sm:$0xff]
    %v289 = vld [vmem:[#allocation7 + $0x118] sm:$0xff]
    %v290 = vld [vmem:[#allocation7 + $0x120] sm:$0xff]
    %v291 = vld [vmem:[#allocation7 + $0x128] sm:$0xff]
    %v292 = vld [vmem:[#allocation7 + $0x130] sm:$0xff]
    %v293 = vld [vmem:[#allocation7 + $0x138] sm:$0xff]
    %v294 = vld [vmem:[#allocation7 + $0x140] sm:$0xff]
    %v295 = vld [vmem:[#allocation7 + $0x148] sm:$0xff]
    %v296 = vld [vmem:[#allocation7 + $0x150] sm:$0xff]
    %v297 = vld [vmem:[#allocation7 + $0x158] sm:$0xff]
    %v298 = vld [vmem:[#allocation7 + $0x160] sm:$0xff]
    %v299 = vld [vmem:[#allocation7 + $0x168] sm:$0xff]
    %v300 = vld [vmem:[#allocation7 + $0x170] sm:$0xff]
    %v301 = vld [vmem:[#allocation7 + $0x178] sm:$0xff]
    %v302 = vld [vmem:[#allocation7 + $0x180] sm:$0xff]
    %v303 = vld [vmem:[#allocation7 + $0x188] sm:$0xff]
    %v304 = vld [vmem:[#allocation7 + $0x190] sm:$0xff]
    %v305 = vld [vmem:[#allocation7 + $0x198] sm:$0xff]
    %v306 = vld [vmem:[#allocation7 + $0x1a0] sm:$0xff]
    %v307 = vld [vmem:[#allocation7 + $0x1a8] sm:$0xff]
    %v308 = vld [vmem:[#allocation7 + $0x1b0] sm:$0xff]
    %v309 = vld [vmem:[#allocation7 + $0x1b8] sm:$0xff]
    %v310 = vld [vmem:[#allocation7 + $0x1c0] sm:$0xff]
    %v311 = vld [vmem:[#allocation7 + $0x1c8] sm:$0xff]
    %v312 = vld [vmem:[#allocation7 + $0x1d0] sm:$0xff]
    %v313 = vld [vmem:[#allocation7 + $0x1d8] sm:$0xff]
    %v314 = vld [vmem:[#allocation7 + $0x1e0] sm:$0xff]
    %v315 = vld [vmem:[#allocation7 + $0x1e8] sm:$0xff]
    %v316 = vld [vmem:[#allocation7 + $0x1f0] sm:$0xff]
    %v317 = vld [vmem:[#allocation7 + $0x1f8] sm:$0xff]
    %v318 = vld [vmem:[#allocation7 + $0x200] sm:$0xff]
    %v319 = vld [vmem:[#allocation7 + $0x208] sm:$0xff]
    %v320 = vld [vmem:[#allocation7 + $0x210] sm:$0xff]
    %v321 = vld [vmem:[#allocation7 + $0x218] sm:$0xff]
    %v322 = vld [vmem:[#allocation7 + $0x220] sm:$0xff]
    %v323 = vld [vmem:[#allocation7 + $0x228] sm:$0xff]
    %v324 = vld [vmem:[#allocation7 + $0x230] sm:$0xff]
    %v325 = vld [vmem:[#allocation7 + $0x238] sm:$0xff]
    %v326 = vld [vmem:[#allocation7 + $0x240] sm:$0xff]
    %v327 = vld [vmem:[#allocation7 + $0x248] sm:$0xff]
    %v328 = vld [vmem:[#allocation7 + $0x250] sm:$0xff]
    %v329 = vld [vmem:[#allocation7 + $0x258] sm:$0xff]
    %v330 = vld [vmem:[#allocation7 + $0x260] sm:$0xff]
    %v331 = vld [vmem:[#allocation7 + $0x268] sm:$0xff]
    %v332 = vld [vmem:[#allocation7 + $0x270] sm:$0xff]
    %v333 = vld [vmem:[#allocation7 + $0x278] sm:$0xff]
    %v334 = vld [vmem:[#allocation7 + $0x280] sm:$0xff]
    %v335 = vld [vmem:[#allocation7 + $0x288] sm:$0xff]
    %v336 = vld [vmem:[#allocation7 + $0x290] sm:$0xff]
    %v337 = vld [vmem:[#allocation7 + $0x298] sm:$0xff]
    %v338 = vld [vmem:[#allocation7 + $0x2a0] sm:$0xff]
    %v339 = vld [vmem:[#allocation7 + $0x2a8] sm:$0xff]
    %v340 = vld [vmem:[#allocation7 + $0x2b0] sm:$0xff]
    %v341 = vld [vmem:[#allocation7 + $0x2b8] sm:$0xff]
    %v342 = vld [vmem:[#allocation7 + $0x2c0] sm:$0xff]
    %v343 = vld [vmem:[#allocation7 + $0x2c8] sm:$0xff]
    %v344 = vld [vmem:[#allocation7 + $0x2d0] sm:$0xff]
    %v345 = vld [vmem:[#allocation7 + $0x2d8] sm:$0xff]
    %v346 = vld [vmem:[#allocation7 + $0x2e0] sm:$0xff]
    %v347 = vld [vmem:[#allocation7 + $0x2e8] sm:$0xff]
    %v348 = vld [vmem:[#allocation7 + $0x2f0] sm:$0xff]
    %v349 = vld [vmem:[#allocation7 + $0x2f8] sm:$0xff]
    %v350 = vld [vmem:[#allocation7 + $0x300] sm:$0xff]
    %v351 = vld [vmem:[#allocation7 + $0x308] sm:$0xff]
    %v352 = vld [vmem:[#allocation7 + $0x310] sm:$0xff]
    %v353 = vld [vmem:[#allocation7 + $0x318] sm:$0xff]
    %v354 = vld [vmem:[#allocation7 + $0x320] sm:$0xff]
    %v355 = vld [vmem:[#allocation7 + $0x328] sm:$0xff]
    %v356 = vld [vmem:[#allocation7 + $0x330] sm:$0xff]
    %v357 = vld [vmem:[#allocation7 + $0x338] sm:$0xff]
    %v358 = vld [vmem:[#allocation7 + $0x340] sm:$0xff]
    %v359 = vld [vmem:[#allocation7 + $0x348] sm:$0xff]
    %v360 = vld [vmem:[#allocation7 + $0x350] sm:$0xff]
    %v361 = vld [vmem:[#allocation7 + $0x358] sm:$0xff]
    %v362 = vld [vmem:[#allocation7 + $0x360] sm:$0xff]
    %v363 = vld [vmem:[#allocation7 + $0x368] sm:$0xff]
    %v364 = vld [vmem:[#allocation7 + $0x370] sm:$0xff]
    %v365 = vld [vmem:[#allocation7 + $0x378] sm:$0xff]
    %v366 = vld [vmem:[#allocation7 + $0x380] sm:$0xff]
    %v367 = vld [vmem:[#allocation7 + $0x388] sm:$0xff]
    %v368 = vld [vmem:[#allocation7 + $0x390] sm:$0xff]
    %v369 = vld [vmem:[#allocation7 + $0x398] sm:$0xff]
    %v370 = vld [vmem:[#allocation7 + $0x3a0] sm:$0xff]
    %v371 = vld [vmem:[#allocation7 + $0x3a8] sm:$0xff]
    %v372 = vld [vmem:[#allocation7 + $0x3b0] sm:$0xff]
    %v373 = vld [vmem:[#allocation7 + $0x3b8] sm:$0xff]
    %v374 = vld [vmem:[#allocation7 + $0x3c0] sm:$0xff]
    %v375 = vld [vmem:[#allocation7 + $0x3c8] sm:$0xff]
    %v376 = vld [vmem:[#allocation7 + $0x3d0] sm:$0xff]
    %v377 = vld [vmem:[#allocation7 + $0x3d8] sm:$0xff]
    %v378 = vld [vmem:[#allocation7 + $0x3e0] sm:$0xff]
    %v379 = vld [vmem:[#allocation7 + $0x3e8] sm:$0xff]
    %v380 = vld [vmem:[#allocation7 + $0x3f0] sm:$0xff]
    %v381 = vld [vmem:[#allocation7 + $0x3f8] sm:$0xff]
    %v382 = vld [vmem:[#allocation7 + $0x400] sm:$0xff]
    %v383 = vld [vmem:[#allocation7 + $0x408] sm:$0xff]
    %v384 = vld [vmem:[#allocation7 + $0x410] sm:$0xff]
    %v385 = vld [vmem:[#allocation7 + $0x418] sm:$0xff]
    %v386 = vld [vmem:[#allocation7 + $0x420] sm:$0xff]
    %v387 = vld [vmem:[#allocation7 + $0x428] sm:$0xff]
    %v388 = vld [vmem:[#allocation7 + $0x430] sm:$0xff]
    %v389 = vld [vmem:[#allocation7 + $0x438] sm:$0xff]
    %v390 = vld [vmem:[#allocation7 + $0x440] sm:$0xff]
    %v391 = vld [vmem:[#allocation7 + $0x448] sm:$0xff]
    %v392 = vld [vmem:[#allocation7 + $0x450] sm:$0xff]
    %v393 = vld [vmem:[#allocation7 + $0x458] sm:$0xff]
    %v394 = vld [vmem:[#allocation7 + $0x460] sm:$0xff]
    %v395 = vld [vmem:[#allocation7 + $0x468] sm:$0xff]
    %v396 = vld [vmem:[#allocation7 + $0x470] sm:$0xff]
    %v397 = vld [vmem:[#allocation7 + $0x478] sm:$0xff]
    %v398 = vld [vmem:[#allocation7 + $0x480] sm:$0xff]
    %v399 = vld [vmem:[#allocation7 + $0x488] sm:$0xff]
    %v400 = vld [vmem:[#allocation7 + $0x490] sm:$0xff]
    %v401 = vld [vmem:[#allocation7 + $0x498] sm:$0xff]
    %v402 = vld [vmem:[#allocation7 + $0x4a0] sm:$0xff]
    %v403 = vld [vmem:[#allocation7 + $0x4a8] sm:$0xff]
    %v404 = vld [vmem:[#allocation7 + $0x4b0] sm:$0xff]
    %v405 = vld [vmem:[#allocation7 + $0x4b8] sm:$0xff]
    %v406 = vld [vmem:[#allocation7 + $0x4c0] sm:$0xff]
    %v407 = vld [vmem:[#allocation7 + $0x4c8] sm:$0xff]
    %v408 = vld [vmem:[#allocation7 + $0x4d0] sm:$0xff]
    %v409 = vld [vmem:[#allocation7 + $0x4d8] sm:$0xff]
    %v410 = vld [vmem:[#allocation7 + $0x4e0] sm:$0xff]
    %v411 = vld [vmem:[#allocation7 + $0x4e8] sm:$0xff]
    %v412 = vld [vmem:[#allocation7 + $0x4f0] sm:$0xff]
    %v413 = vld [vmem:[#allocation7 + $0x4f8] sm:$0xff]
    %v414 = vld [vmem:[#allocation7 + $0x500] sm:$0xff]
    %v415 = vld [vmem:[#allocation7 + $0x508] sm:$0xff]
    %v416 = vld [vmem:[#allocation7 + $0x510] sm:$0xff]
    %v417 = vld [vmem:[#allocation7 + $0x518] sm:$0xff]
    %v418 = vld [vmem:[#allocation7 + $0x520] sm:$0xff]
    %v419 = vld [vmem:[#allocation7 + $0x528] sm:$0xff]
    %v420 = vld [vmem:[#allocation7 + $0x530] sm:$0xff]
    %v421 = vld [vmem:[#allocation7 + $0x538] sm:$0xff]
    %v422 = vld [vmem:[#allocation7 + $0x540] sm:$0xff]
    %v423 = vld [vmem:[#allocation7 + $0x548] sm:$0xff]
    %v424 = vld [vmem:[#allocation7 + $0x550] sm:$0xff]
    %v425 = vld [vmem:[#allocation7 + $0x558] sm:$0xff]
    %v426 = vld [vmem:[#allocation7 + $0x560] sm:$0xff]
    %v427 = vld [vmem:[#allocation7 + $0x568] sm:$0xff]
    %v428 = vld [vmem:[#allocation7 + $0x570] sm:$0xff]
    %v429 = vld [vmem:[#allocation7 + $0x578] sm:$0xff]
    %v430 = vld [vmem:[#allocation7 + $0x580] sm:$0xff]
    %v431 = vld [vmem:[#allocation7 + $0x588] sm:$0xff]
    %v432 = vld [vmem:[#allocation7 + $0x590] sm:$0xff]
    %v433 = vld [vmem:[#allocation7 + $0x598] sm:$0xff]
    %v434 = vld [vmem:[#allocation7 + $0x5a0] sm:$0xff]
    %v435 = vld [vmem:[#allocation7 + $0x5a8] sm:$0xff]
    %v436 = vld [vmem:[#allocation7 + $0x5b0] sm:$0xff]
    %v437 = vld [vmem:[#allocation7 + $0x5b8] sm:$0xff]
    %v438 = vld [vmem:[#allocation7 + $0x5c0] sm:$0xff]
    %v439 = vld [vmem:[#allocation7 + $0x5c8] sm:$0xff]
    %v440 = vld [vmem:[#allocation7 + $0x5d0] sm:$0xff]
    %v441 = vld [vmem:[#allocation7 + $0x5d8] sm:$0xff]
    %v442 = vld [vmem:[#allocation7 + $0x5e0] sm:$0xff]
    %v443 = vld [vmem:[#allocation7 + $0x5e8] sm:$0xff]
    %v444 = vld [vmem:[#allocation7 + $0x5f0] sm:$0xff]
    %v445 = vld [vmem:[#allocation7 + $0x5f8] sm:$0xff]
    %v446 = vld [vmem:[%s1] sm:$0xff]
    %v447 = vld [vmem:[%s5] sm:$0xff]
    %v448 = vld [vmem:[%s5 + $0x8] sm:$0xf]
    %v451 = vcombine.high %v447, %v447
    %vm452 = vcmask 31744
    %v454 = vsel %vm452, %v446, 0
    %vm456 = vcmask 1043456
    %v457 = vsel %vm456, %v447, 0
    %v459 = vsel %vm456, %v451, 0
    %v461 = vsel %vm456, %v448, 0
    %463 = vmatprep.subr.mxu0 0.0
    %464 = vmatpush1.msra.mxu0 0.0
    %465 = vmatprep.subr.mxu0 0.0
    %466 = vmatpush1.msra.mxu0 0.0
    %467 = vmatprep.subr.mxu0 0.0
    %468 = vmatpush1.msra.mxu0 0.0
    %469 = vmatprep.subr.mxu0 0.0
    %470 = vmatpush1.msra.mxu0 0.0
    %471 = vmatprep.subr.mxu0 0.0
    %472 = vmatpush1.msra.mxu0 0.0
    %473 = vmatprep.subr.mxu0 0.0
    %474 = vmatpush1.msra.mxu0 0.0
    %475 = vmatprep.subr.mxu0 0.0
    %476 = vmatpush1.msra.mxu0 0.0
    %477 = vmatprep.subr.mxu0 0.0
    %478 = vmatpush1.msra.mxu0 0.0
    %479 = vmatprep.subr.mxu0 0.0
    %480 = vmatpush1.msra.mxu0 0.0
    %481 = vmatprep.subr.mxu0 0.0
    %482 = vmatpush1.msra.mxu0 0.0
    %483 = vmatprep.subr.mxu0 0.0
    %484 = vmatpush1.msra.mxu0 0.0
    %485 = vmatprep.subr.mxu0 0.0
    %486 = vmatpush1.msra.mxu0 0.0
    %487 = vmatprep.subr.mxu0 0.0
    %488 = vmatpush1.msra.mxu0 0.0
    %489 = vmatprep.subr.mxu0 0.0
    %490 = vmatpush1.msra.mxu0 0.0
    %491 = vmatprep.subr.mxu0 0.0
    %492 = vmatpush1.msra.mxu0 0.0
    %493 = vmatprep.subr.mxu0 %v459
    %494 = vmatpush1.msra.mxu0 %v457
    %495 = vmatprep.subr.mxu0 0.0
    %496 = vmatpush2.msra.mxu0 0.0
    %497 = vmatprep.subr.mxu0 0.0
    %498 = vmatpush2.msra.mxu0 0.0
    %499 = vmatprep.subr.mxu0 0.0
    %500 = vmatpush2.msra.mxu0 0.0
    %501 = vmatprep.subr.mxu0 0.0
    %502 = vmatpush2.msra.mxu0 0.0
    %503 = vmatprep.subr.mxu0 0.0
    %504 = vmatpush2.msra.mxu0 0.0
    %505 = vmatprep.subr.mxu0 0.0
    %506 = vmatpush2.msra.mxu0 0.0
    %507 = vmatprep.subr.mxu0 0.0
    %508 = vmatpush2.msra.mxu0 0.0
    %509 = vmatprep.subr.mxu0 0.0
    %510 = vmatpush2.msra.mxu0 0.0
    %511 = vmatprep.subr.mxu0 0.0
    %512 = vmatpush2.msra.mxu0 0.0
    %513 = vmatprep.subr.mxu0 0.0
    %514 = vmatpush2.msra.mxu0 0.0
    %515 = vmatprep.subr.mxu0 0.0
    %516 = vmatpush2.msra.mxu0 0.0
    %517 = vmatprep.subr.mxu0 0.0
    %518 = vmatpush2.msra.mxu0 0.0
    %519 = vmatprep.subr.mxu0 0.0
    %520 = vmatpush2.msra.mxu0 0.0
    %521 = vmatprep.subr.mxu0 0.0
    %522 = vmatpush2.msra.mxu0 0.0
    %523 = vmatprep.subr.mxu0 0.0
    %524 = vmatpush2.msra.mxu0 0.0
    %525 = vmatprep.subr.mxu0 0.0
    %526 = vmatpush2.msra.mxu0 0.0
    %527 = vmatprep.mubr.f32.mxu0 0.0
    %528 = vmatmul.mubr.f32.gmra.mxu0 %v454
    %v529 = vpop.f32.mrf.mxu0
    %v530 = vadd.f32 0.0, %v529
    %v531 = vpop.f32.mrf.mxu0
    %v532 = vadd.f32 0.0, %v531
    %533 = vdwg.mxu0
    %534 = vmatprep.subr.mxu0 0.0
    %535 = vmatpush1.msra.mxu0 0.0
    %536 = vmatprep.subr.mxu0 0.0
    %537 = vmatpush1.msra.mxu0 0.0
    %538 = vmatprep.subr.mxu0 0.0
    %539 = vmatpush1.msra.mxu0 0.0
    %540 = vmatprep.subr.mxu0 0.0
    %541 = vmatpush1.msra.mxu0 0.0
    %542 = vmatprep.subr.mxu0 0.0
    %543 = vmatpush1.msra.mxu0 0.0
    %544 = vmatprep.subr.mxu0 0.0
    %545 = vmatpush1.msra.mxu0 0.0
    %546 = vmatprep.subr.mxu0 0.0
    %547 = vmatpush1.msra.mxu0 0.0
    %548 = vmatprep.subr.mxu0 0.0
    %549 = vmatpush1.msra.mxu0 0.0
    %550 = vmatprep.subr.mxu0 0.0
    %551 = vmatpush1.msra.mxu0 0.0
    %552 = vmatprep.subr.mxu0 0.0
    %553 = vmatpush1.msra.mxu0 0.0
    %554 = vmatprep.subr.mxu0 0.0
    %555 = vmatpush1.msra.mxu0 0.0
    %556 = vmatprep.subr.mxu0 0.0
    %557 = vmatpush1.msra.mxu0 0.0
    %558 = vmatprep.subr.mxu0 0.0
    %559 = vmatpush1.msra.mxu0 0.0
    %560 = vmatprep.subr.mxu0 0.0
    %561 = vmatpush1.msra.mxu0 0.0
    %562 = vmatprep.subr.mxu0 0.0
    %563 = vmatpush1.msra.mxu0 0.0
    %564 = vmatprep.subr.mxu0 0.0
    %565 = vmatpush1.msra.mxu0 %v461
    %566 = vmatprep.subr.mxu0 0.0
    %567 = vmatpush2.msra.mxu0 0.0
    %568 = vmatprep.subr.mxu0 0.0
    %569 = vmatpush2.msra.mxu0 0.0
    %570 = vmatprep.subr.mxu0 0.0
    %571 = vmatpush2.msra.mxu0 0.0
    %572 = vmatprep.subr.mxu0 0.0
    %573 = vmatpush2.msra.mxu0 0.0
    %574 = vmatprep.subr.mxu0 0.0
    %575 = vmatpush2.msra.mxu0 0.0
    %576 = vmatprep.subr.mxu0 0.0
    %577 = vmatpush2.msra.mxu0 0.0
    %578 = vmatprep.subr.mxu0 0.0
    %579 = vmatpush2.msra.mxu0 0.0
    %580 = vmatprep.subr.mxu0 0.0
    %581 = vmatpush2.msra.mxu0 0.0
    %582 = vmatprep.subr.mxu0 0.0
    %583 = vmatpush2.msra.mxu0 0.0
    %584 = vmatprep.subr.mxu0 0.0
    %585 = vmatpush2.msra.mxu0 0.0
    %586 = vmatprep.subr.mxu0 0.0
    %587 = vmatpush2.msra.mxu0 0.0
    %588 = vmatprep.subr.mxu0 0.0
    %589 = vmatpush2.msra.mxu0 0.0
    %590 = vmatprep.subr.mxu0 0.0
    %591 = vmatpush2.msra.mxu0 0.0
    %592 = vmatprep.subr.mxu0 0.0
    %593 = vmatpush2.msra.mxu0 0.0
    %594 = vmatprep.subr.mxu0 0.0
    %595 = vmatpush2.msra.mxu0 0.0
    %596 = vmatprep.subr.mxu0 0.0
    %597 = vmatpush2.msra.mxu0 0.0
    %598 = vmatprep.mubr.f32.mxu0 0.0
    %599 = vmatmul.mubr.f32.gmra.mxu0 %v454
    %v600 = vpop.f32.mrf.mxu0
    %v601 = vadd.f32 0.0, %v600
    %v602 = vpop.f32.mrf.mxu0
    %603 = vdwg.mxu0
    %604 = vmatprep.subr.mxu0 %v300
    %605 = vmatpush1.msra.mxu0 %v299
    %606 = vmatprep.subr.mxu0 %v297
    %607 = vmatpush1.msra.mxu0 %v296
    %608 = vmatprep.subr.mxu0 %v294
    %609 = vmatpush1.msra.mxu0 %v293
    %610 = vmatprep.subr.mxu0 %v291
    %611 = vmatpush1.msra.mxu0 %v290
    %612 = vmatprep.subr.mxu0 %v288
    %613 = vmatpush1.msra.mxu0 %v287
    %614 = vmatprep.subr.mxu0 %v285
    %615 = vmatpush1.msra.mxu0 %v284
    %616 = vmatprep.subr.mxu0 %v282
    %617 = vmatpush1.msra.mxu0 %v281
    %618 = vmatprep.subr.mxu0 %v279
    %619 = vmatpush1.msra.mxu0 %v278
    %620 = vmatprep.subr.mxu0 %v276
    %621 = vmatpush1.msra.mxu0 %v275
    %622 = vmatprep.subr.mxu0 %v273
    %623 = vmatpush1.msra.mxu0 %v272
    %624 = vmatprep.subr.mxu0 %v270
    %625 = vmatpush1.msra.mxu0 %v269
    %626 = vmatprep.subr.mxu0 %v267
    %627 = vmatpush1.msra.mxu0 %v266
    %628 = vmatprep.subr.mxu0 %v264
    %629 = vmatpush1.msra.mxu0 %v263
    %630 = vmatprep.subr.mxu0 %v261
    %631 = vmatpush1.msra.mxu0 %v260
    %632 = vmatprep.subr.mxu0 %v258
    %633 = vmatpush1.msra.mxu0 %v257
    %634 = vmatprep.subr.mxu0 %v255
    %635 = vmatpush1.msra.mxu0 %v254
    %636 = vmatprep.subr.mxu0 %v348
    %637 = vmatpush2.msra.mxu0 %v347
    %638 = vmatprep.subr.mxu0 %v345
    %639 = vmatpush2.msra.mxu0 %v344
    %640 = vmatprep.subr.mxu0 %v342
    %641 = vmatpush2.msra.mxu0 %v341
    %642 = vmatprep.subr.mxu0 %v339
    %643 = vmatpush2.msra.mxu0 %v338
    %644 = vmatprep.subr.mxu0 %v336
    %645 = vmatpush2.msra.mxu0 %v335
    %646 = vmatprep.subr.mxu0 %v333
    %647 = vmatpush2.msra.mxu0 %v332
    %648 = vmatprep.subr.mxu0 %v330
    %649 = vmatpush2.msra.mxu0 %v329
    %650 = vmatprep.subr.mxu0 %v327
    %651 = vmatpush2.msra.mxu0 %v326
    %652 = vmatprep.subr.mxu0 %v324
    %653 = vmatpush2.msra.mxu0 %v323
    %654 = vmatprep.subr.mxu0 %v321
    %655 = vmatpush2.msra.mxu0 %v320
    %656 = vmatprep.subr.mxu0 %v318
    %657 = vmatpush2.msra.mxu0 %v317
    %658 = vmatprep.subr.mxu0 %v315
    %659 = vmatpush2.msra.mxu0 %v314
    %660 = vmatprep.subr.mxu0 %v312
    %661 = vmatpush2.msra.mxu0 %v311
    %662 = vmatprep.subr.mxu0 %v309
    %663 = vmatpush2.msra.mxu0 %v308
    %664 = vmatprep.subr.mxu0 %v306
    %665 = vmatpush2.msra.mxu0 %v305
    %666 = vmatprep.subr.mxu0 %v303
    %667 = vmatpush2.msra.mxu0 %v302
    %668 = vmatprep.mubr.f32.mxu0 %v251
    %669 = vmatmul.mubr.f32.gmra.mxu0 %v250
    %v670 = vpop.f32.mrf.mxu0
    %v671 = vadd.f32 %v530, %v670
    %v672 = vpop.f32.mrf.mxu0
    %v673 = vadd.f32 %v532, %v672
    %674 = vdwg.mxu0
    %675 = vmatprep.subr.mxu0 %v396
    %676 = vmatpush1.msra.mxu0 %v395
    %677 = vmatprep.subr.mxu0 %v393
    %678 = vmatpush1.msra.mxu0 %v392
    %679 = vmatprep.subr.mxu0 %v390
    %680 = vmatpush1.msra.mxu0 %v389
    %681 = vmatprep.subr.mxu0 %v387
    %682 = vmatpush1.msra.mxu0 %v386
    %683 = vmatprep.subr.mxu0 %v384
    %684 = vmatpush1.msra.mxu0 %v383
    %685 = vmatprep.subr.mxu0 %v381
    %686 = vmatpush1.msra.mxu0 %v380
    %687 = vmatprep.subr.mxu0 %v378
    %688 = vmatpush1.msra.mxu0 %v377
    %689 = vmatprep.subr.mxu0 %v375
    %690 = vmatpush1.msra.mxu0 %v374
    %691 = vmatprep.subr.mxu0 %v372
    %692 = vmatpush1.msra.mxu0 %v371
    %693 = vmatprep.subr.mxu0 %v369
    %694 = vmatpush1.msra.mxu0 %v368
    %695 = vmatprep.subr.mxu0 %v366
    %696 = vmatpush1.msra.mxu0 %v365
    %697 = vmatprep.subr.mxu0 %v363
    %698 = vmatpush1.msra.mxu0 %v362
    %699 = vmatprep.subr.mxu0 %v360
    %700 = vmatpush1.msra.mxu0 %v359
    %701 = vmatprep.subr.mxu0 %v357
    %702 = vmatpush1.msra.mxu0 %v356
    %703 = vmatprep.subr.mxu0 %v354
    %704 = vmatpush1.msra.mxu0 %v353
    %705 = vmatprep.subr.mxu0 %v351
    %706 = vmatpush1.msra.mxu0 %v350
    %707 = vmatprep.subr.mxu0 %v444
    %708 = vmatpush2.msra.mxu0 %v443
    %709 = vmatprep.subr.mxu0 %v441
    %710 = vmatpush2.msra.mxu0 %v440
    %711 = vmatprep.subr.mxu0 %v438
    %712 = vmatpush2.msra.mxu0 %v437
    %713 = vmatprep.subr.mxu0 %v435
    %714 = vmatpush2.msra.mxu0 %v434
    %715 = vmatprep.subr.mxu0 %v432
    %716 = vmatpush2.msra.mxu0 %v431
    %717 = vmatprep.subr.mxu0 %v429
    %718 = vmatpush2.msra.mxu0 %v428
    %719 = vmatprep.subr.mxu0 %v426
    %720 = vmatpush2.msra.mxu0 %v425
    %721 = vmatprep.subr.mxu0 %v423
    %722 = vmatpush2.msra.mxu0 %v422
    %723 = vmatprep.subr.mxu0 %v420
    %724 = vmatpush2.msra.mxu0 %v419
    %725 = vmatprep.subr.mxu0 %v417
    %726 = vmatpush2.msra.mxu0 %v416
    %727 = vmatprep.subr.mxu0 %v414
    %728 = vmatpush2.msra.mxu0 %v413
    %729 = vmatprep.subr.mxu0 %v411
    %730 = vmatpush2.msra.mxu0 %v410
    %731 = vmatprep.subr.mxu0 %v408
    %732 = vmatpush2.msra.mxu0 %v407
    %733 = vmatprep.subr.mxu0 %v405
    %734 = vmatpush2.msra.mxu0 %v404
    %735 = vmatprep.subr.mxu0 %v402
    %736 = vmatpush2.msra.mxu0 %v401
    %737 = vmatprep.subr.mxu0 %v399
    %738 = vmatpush2.msra.mxu0 %v398
    %739 = vmatprep.mubr.f32.mxu0 %v253
    %740 = vmatmul.mubr.f32.gmra.mxu0 %v252
    %v741 = vpop.f32.mrf.mxu0
    %v742 = vadd.f32 %v671, %v741
    %v743 = vpop.f32.mrf.mxu0
    %v744 = vadd.f32 %v673, %v743
    %745 = vdwg.mxu0
    %746 = vmatprep.subr.mxu0 0.0
    %747 = vmatpush1.msra.mxu0 %v301
    %748 = vmatprep.subr.mxu0 0.0
    %749 = vmatpush1.msra.mxu0 %v298
    %750 = vmatprep.subr.mxu0 0.0
    %751 = vmatpush1.msra.mxu0 %v295
    %752 = vmatprep.subr.mxu0 0.0
    %753 = vmatpush1.msra.mxu0 %v292
    %754 = vmatprep.subr.mxu0 0.0
    %755 = vmatpush1.msra.mxu0 %v289
    %756 = vmatprep.subr.mxu0 0.0
    %757 = vmatpush1.msra.mxu0 %v286
    %758 = vmatprep.subr.mxu0 0.0
    %759 = vmatpush1.msra.mxu0 %v283
    %760 = vmatprep.subr.mxu0 0.0
    %761 = vmatpush1.msra.mxu0 %v280
    %762 = vmatprep.subr.mxu0 0.0
    %763 = vmatpush1.msra.mxu0 %v277
    %764 = vmatprep.subr.mxu0 0.0
    %765 = vmatpush1.msra.mxu0 %v274
    %766 = vmatprep.subr.mxu0 0.0
    %767 = vmatpush1.msra.mxu0 %v271
    %768 = vmatprep.subr.mxu0 0.0
    %769 = vmatpush1.msra.mxu0 %v268
    %770 = vmatprep.subr.mxu0 0.0
    %771 = vmatpush1.msra.mxu0 %v265
    %772 = vmatprep.subr.mxu0 0.0
    %773 = vmatpush1.msra.mxu0 %v262
    %774 = vmatprep.subr.mxu0 0.0
    %775 = vmatpush1.msra.mxu0 %v259
    %776 = vmatprep.subr.mxu0 0.0
    %777 = vmatpush1.msra.mxu0 %v256
    %778 = vmatprep.subr.mxu0 0.0
    %779 = vmatpush2.msra.mxu0 %v349
    %780 = vmatprep.subr.mxu0 0.0
    %781 = vmatpush2.msra.mxu0 %v346
    %782 = vmatprep.subr.mxu0 0.0
    %783 = vmatpush2.msra.mxu0 %v343
    %784 = vmatprep.subr.mxu0 0.0
    %785 = vmatpush2.msra.mxu0 %v340
    %786 = vmatprep.subr.mxu0 0.0
    %787 = vmatpush2.msra.mxu0 %v337
    %788 = vmatprep.subr.mxu0 0.0
    %789 = vmatpush2.msra.mxu0 %v334
    %790 = vmatprep.subr.mxu0 0.0
    %791 = vmatpush2.msra.mxu0 %v331
    %792 = vmatprep.subr.mxu0 0.0
    %793 = vmatpush2.msra.mxu0 %v328
    %794 = vmatprep.subr.mxu0 0.0
    %795 = vmatpush2.msra.mxu0 %v325
    %796 = vmatprep.subr.mxu0 0.0
    %797 = vmatpush2.msra.mxu0 %v322
    %798 = vmatprep.subr.mxu0 0.0
    %799 = vmatpush2.msra.mxu0 %v319
    %800 = vmatprep.subr.mxu0 0.0
    %801 = vmatpush2.msra.mxu0 %v316
    %802 = vmatprep.subr.mxu0 0.0
    %803 = vmatpush2.msra.mxu0 %v313
    %804 = vmatprep.subr.mxu0 0.0
    %805 = vmatpush2.msra.mxu0 %v310
    %806 = vmatprep.subr.mxu0 0.0
    %807 = vmatpush2.msra.mxu0 %v307
    %808 = vmatprep.subr.mxu0 0.0
    %809 = vmatpush2.msra.mxu0 %v304
    %810 = vmatprep.mubr.f32.mxu0 %v251
    %811 = vmatmul.mubr.f32.gmra.mxu0 %v250
    %v812 = vpop.f32.mrf.mxu0
    %v813 = vadd.f32 %v601, %v812
    %v814 = vpop.f32.mrf.mxu0
    %815 = vdwg.mxu0
    %816 = vmatprep.subr.mxu0 0.0
    %817 = vmatpush1.msra.mxu0 %v397
    %818 = vmatprep.subr.mxu0 0.0
    %819 = vmatpush1.msra.mxu0 %v394
    %820 = vmatprep.subr.mxu0 0.0
    %821 = vmatpush1.msra.mxu0 %v391
    %822 = vmatprep.subr.mxu0 0.0
    %823 = vmatpush1.msra.mxu0 %v388
    %824 = vmatprep.subr.mxu0 0.0
    %825 = vmatpush1.msra.mxu0 %v385
    %826 = vmatprep.subr.mxu0 0.0
    %827 = vmatpush1.msra.mxu0 %v382
    %828 = vmatprep.subr.mxu0 0.0
    %829 = vmatpush1.msra.mxu0 %v379
    %830 = vmatprep.subr.mxu0 0.0
    %831 = vmatpush1.msra.mxu0 %v376
    %832 = vmatprep.subr.mxu0 0.0
    %833 = vmatpush1.msra.mxu0 %v373
    %834 = vmatprep.subr.mxu0 0.0
    %835 = vmatpush1.msra.mxu0 %v370
    %836 = vmatprep.subr.mxu0 0.0
    %837 = vmatpush1.msra.mxu0 %v367
    %838 = vmatprep.subr.mxu0 0.0
    %839 = vmatpush1.msra.mxu0 %v364
    %840 = vmatprep.subr.mxu0 0.0
    %841 = vmatpush1.msra.mxu0 %v361
    %842 = vmatprep.subr.mxu0 0.0
    %843 = vmatpush1.msra.mxu0 %v358
    %844 = vmatprep.subr.mxu0 0.0
    %845 = vmatpush1.msra.mxu0 %v355
    %846 = vmatprep.subr.mxu0 0.0
    %847 = vmatpush1.msra.mxu0 %v352
    %848 = vmatprep.subr.mxu0 0.0
    %849 = vmatpush2.msra.mxu0 %v445
    %850 = vmatprep.subr.mxu0 0.0
    %851 = vmatpush2.msra.mxu0 %v442
    %852 = vmatprep.subr.mxu0 0.0
    %853 = vmatpush2.msra.mxu0 %v439
    %854 = vmatprep.subr.mxu0 0.0
    %855 = vmatpush2.msra.mxu0 %v436
    %856 = vmatprep.subr.mxu0 0.0
    %857 = vmatpush2.msra.mxu0 %v433
    %858 = vmatprep.subr.mxu0 0.0
    %859 = vmatpush2.msra.mxu0 %v430
    %860 = vmatprep.subr.mxu0 0.0
    %861 = vmatpush2.msra.mxu0 %v427
    %862 = vmatprep.subr.mxu0 0.0
    %863 = vmatpush2.msra.mxu0 %v424
    %864 = vmatprep.subr.mxu0 0.0
    %865 = vmatpush2.msra.mxu0 %v421
    %866 = vmatprep.subr.mxu0 0.0
    %867 = vmatpush2.msra.mxu0 %v418
    %868 = vmatprep.subr.mxu0 0.0
    %869 = vmatpush2.msra.mxu0 %v415
    %870 = vmatprep.subr.mxu0 0.0
    %871 = vmatpush2.msra.mxu0 %v412
    %872 = vmatprep.subr.mxu0 0.0
    %873 = vmatpush2.msra.mxu0 %v409
    %874 = vmatprep.subr.mxu0 0.0
    %875 = vmatpush2.msra.mxu0 %v406
    %876 = vmatprep.subr.mxu0 0.0
    %877 = vmatpush2.msra.mxu0 %v403
    %878 = vmatprep.subr.mxu0 0.0
    %879 = vmatpush2.msra.mxu0 %v400
    %880 = vmatprep.mubr.f32.mxu0 %v253
    %881 = vmatmul.mubr.f32.gmra.mxu0 %v252
    %v882 = vpop.f32.mrf.mxu0
    %v883 = vadd.f32 %v813, %v882
    %v884 = vpop.f32.mrf.mxu0
    %885 = vdwg.mxu0
    %v886 = vld [vmem:[%s6] sm:$0x7]
    %v888 = vlaneseq
    %v889 = vshrl.u32 %v888, 7
    %v890 = vsub.s32 0, %v889
    %v891 = vrot.slane %v886, %v890
    %v892 = vlaneseq
    %v893 = vshrl.u32 %v892, 7
    %v894 = vsub.s32 1, %v893
    %v895 = vrot.slane %v886, %v894
    %v896 = vlaneseq
    %v897 = vshrl.u32 %v896, 7
    %v898 = vsub.s32 2, %v897
    %v899 = vrot.slane %v886, %v898
    %v903 = vadd.f32 %v742, %v891
    %v904 = vadd.f32 %v744, %v895
    %v905 = vadd.f32 %v883, %v899
    %v906 = vmax.f32 %v903, 0.0
    %v907 = vmax.f32 %v904, 0.0
    %v908 = vmax.f32 %v905, 0.0
    %v909 = vld [vmem:[%s7] sm:$0x7]
    %v911 = vlaneseq
    %v912 = vshrl.u32 %v911, 7
    %v913 = vsub.s32 0, %v912
    %v914 = vrot.slane %v909, %v913
    %v915 = vlaneseq
    %v916 = vshrl.u32 %v915, 7
    %v917 = vsub.s32 1, %v916
    %v918 = vrot.slane %v909, %v917
    %v919 = vlaneseq
    %v920 = vshrl.u32 %v919, 7
    %v921 = vsub.s32 2, %v920
    %v922 = vrot.slane %v909, %v921
    %v926 = vmul.f32 %v906, %v914
    %v927 = vmul.f32 %v907, %v918
    %v928 = vmul.f32 %v908, %v922
    %v929 = vadd.f32 %v926, %v927
    %v930 = vadd.f32 %v929, %v928
    %931 = vadd.xlane.f32.xlu0 %v930
    %v932 = vpop.xlane.xlu0 %931
    %v933 = vld [vmem:[#allocation2] sm:$0x1]
    %v935 = vlaneseq
    %v936 = vshrl.u32 %v935, 7
    %v937 = vsub.s32 0, %v936
    %v938 = vrot.slane %v933, %v937
    %v940 = vadd.f32 %v932, %v938
    %vm941 = vcmask 7168
    %942 = vst.msk [vmem:[%s9] sm:$0xff] %vm941, %v940
    // Predicated region
    $region50: #{tpu_custom_call.1} parent=1 // pred_check
      _
    $region51: #{tpu_custom_call.1} parent=1 // pred_check_branch
      %944 = sbr.rel (0) target = $region53
    $region52: #{tpu_custom_call.1} parent=1 // pred_region
      _
    $region53: #{tpu_custom_call.1} parent=1 // pred_fallthru
      _
    // Predicated region
    $region54: #{tpu_custom_call.1} parent=1 // pred_check
      _
    $region55: #{tpu_custom_call.1} parent=1 // pred_check_branch
      %946 = sbr.rel (0) target = $region57
    $region56: #{tpu_custom_call.1} parent=1 // pred_region
      _
    $region57: #{tpu_custom_call.1} parent=1 // pred_fallthru
      _
    %947 = vsyncpa [#allocation4], 1
    %948 = vsyncpa [#allocation6], 1

</llo_original>
